<compile_context>
chip_gen: v7x
topology: tpu7x:2x2x1
jax: 0.10.0
libtpu: 0.0.40
codegen_flags: <defaults>
</compile_context>

<pallas_src>
import functools
import math

import jax
import jax.numpy as jnp
import numpy as np
from jax.experimental import pallas as pl
from jax.experimental.pallas import tpu as pltpu

_LOG2 = math.log(2.0)
_LOG_2PI = math.log(2.0 * math.pi)


def _round_up(x, m):
    return ((x + m - 1) // m) * m


def _pick_tiles(batch, batch_tile):
    """Pad batch to a multiple of 16 and split into >=2 tiles when possible."""
    bp0 = _round_up(batch, 16)
    n_tiles = max(2 if bp0 > 16 else 1, pl.cdiv(bp0, batch_tile))
    tb = _round_up(pl.cdiv(bp0, n_tiles), 16)
    bp = _round_up(bp0, tb)
    return bp, tb, (bp // tb,)


# ----------------------------------------------------------------- kernels

def actor_train_kernel(obs_ref, w1_ref, b1_ref, w2_ref, b2_ref,
                       w3h_ref, b3h_ref, noise_ref,
                       out_ref, noise_buf, *, action_dim):
    f32 = jnp.float32
    bf16 = jnp.bfloat16
    lanes = out_ref.shape[1]

    # MLP trunk: bf16 MXU inputs, f32 accumulation, f32 elementwise.
    h = jnp.dot(obs_ref[...], w1_ref[...], preferred_element_type=f32) + b1_ref[...]
    h = jnp.maximum(h, 0.0)
    h = jnp.dot(h.astype(bf16), w2_ref[...], preferred_element_type=f32) + b2_ref[...]
    h = jnp.maximum(h, 0.0)

    # Fused head: single (TB, 2*LANES) matmul; split at the 128-lane boundary.
    head = jnp.dot(h.astype(bf16), w3h_ref[...], preferred_element_type=f32) + b3h_ref[...]
    mean = head[:, :lanes]
    log_std = jnp.clip(head[:, lanes:], -20.0, 2.0)
    std = jnp.exp(log_std)

    # Widen noise (TB, A) -> (TB, LANES) via zero-filled VMEM scratch + masked store.
    noise_buf[...] = jnp.zeros_like(noise_buf)
    noise_buf[:, :action_dim] = noise_ref[...]
    noise = noise_buf[...]

    # TanhNormal.rsample(): pre_tanh = mean + std * eps, action = tanh(pre_tanh)
    pre_tanh = mean + std * noise
    action = jnp.tanh(pre_tanh)

    # Normal(mean, std).log_prob(pre_tanh); z == noise exactly (no divide).
    normal_lp = -0.5 * noise * noise - log_std - 0.5 * _LOG_2PI

    # tanh log-det: 2*log2 + logsig(2x) + logsig(-2x)
    #             == 2 * (log2 - x - softplus(-2x))  -> single stable softplus.
    t = -2.0 * pre_tanh
    softplus_t = jnp.maximum(t, 0.0) + jnp.log1p(jnp.exp(-jnp.abs(t)))
    log_det = 2.0 * (_LOG2 - pre_tanh - softplus_t)

    lp = normal_lp - log_det

    # Pack (action | summed log_prob) into one lane-dense output slab.
    lane = jax.lax.broadcasted_iota(jnp.int32, out_ref.shape, 1)
    valid = lane < action_dim
    lp_sum = jnp.sum(jnp.where(valid, lp, 0.0), axis=1, keepdims=True)
    slab = jnp.where(valid, action, 0.0)
    slab = jnp.where(lane == action_dim, lp_sum, slab)
    out_ref[...] = slab


def actor_eval_kernel(obs_ref, w1_ref, b1_ref, w2_ref, b2_ref,
                      w3m_ref, b3m_ref, out_ref):
    f32 = jnp.float32
    bf16 = jnp.bfloat16
    h = jnp.dot(obs_ref[...], w1_ref[...], preferred_element_type=f32) + b1_ref[...]
    h = jnp.maximum(h, 0.0)
    h = jnp.dot(h.astype(bf16), w2_ref[...], preferred_element_type=f32) + b2_ref[...]
    h = jnp.maximum(h, 0.0)
    mean = jnp.dot(h.astype(bf16), w3m_ref[...], preferred_element_type=f32) + b3m_ref[...]
    out_ref[...] = jnp.tanh(mean)


# ------------------------------------------------------------- weight prep

def prepare_actor_params(params):
    """One-time host-side re-layout. Idempotent: call once and reuse the result.

    Splits w3/b3 into mean / log_std heads, zero-pads each head to a 128-lane
    aligned width, concatenates them into a single fused head weight (train),
    and casts matmul weights to bf16.
    """
    if "w3h" in params:   # already prepared
        return params
    f32, bf16 = jnp.float32, jnp.bfloat16
    w3 = jnp.asarray(params["w3"], f32)
    b3 = jnp.asarray(params["b3"], f32).reshape(1, -1)
    A = w3.shape[1] // 2
    LANES = 128 * pl.cdiv(A + 1, 128)   # action lanes + 1 log-prob lane, 128-aligned
    pad = LANES - A
    w3m = jnp.pad(w3[:, :A], ((0, 0), (0, pad)))
    w3s = jnp.pad(w3[:, A:2 * A], ((0, 0), (0, pad)))
    b3m = jnp.pad(b3[:, :A], ((0, 0), (0, pad)))
    b3s = jnp.pad(b3[:, A:2 * A], ((0, 0), (0, pad)))
    return dict(
        action_dim=int(A),
        w1=jnp.asarray(params["w1"], f32).astype(bf16),
        b1=jnp.asarray(params["b1"], f32).reshape(1, -1),
        w2=jnp.asarray(params["w2"], f32).astype(bf16),
        b2=jnp.asarray(params["b2"], f32).reshape(1, -1),
        w3h=jnp.concatenate([w3m, w3s], axis=1).astype(bf16),   # fused head (H2, 2*LANES)
        b3h=jnp.concatenate([b3m, b3s], axis=1),
        w3m=w3m.astype(bf16),                                   # eval-only mean head
        b3m=b3m,
    )


# --------------------------------------------------------- jitted forwards

@functools.partial(jax.jit, static_argnames=("action_dim", "batch_tile"))
def _forward_train(obs, noise, w1, b1, w2, b2, w3h, b3h, *, action_dim, batch_tile):
    A = action_dim
    B, S = obs.shape
    LANES = w3h.shape[1] // 2
    H1, H2 = w1.shape[1], w2.shape[1]
    Bp, TB, grid = _pick_tiles(B, batch_tile)

    obs_p = jnp.pad(obs, ((0, Bp - B), (0, 0))).astype(jnp.bfloat16)
    noise_p = jnp.pad(noise, ((0, Bp - B), (0, 0)))   # (Bp, A) — no lane padding in HBM

    pinned = lambda arr: pl.BlockSpec(arr.shape, lambda i: (0, 0))
    row = lambda cols: pl.BlockSpec((TB, cols), lambda i: (i, 0))

    weight_bytes = ((w1.size + w2.size + w3h.size) * 2
                    + (b1.size + b2.size + b3h.size) * 4)
    cost = pl.CostEstimate(
        flops=2 * Bp * (S * H1 + H1 * H2 + H2 * 2 * LANES),
        transcendentals=4 * Bp * LANES,
        bytes_accessed=weight_bytes + obs_p.size * 2 + noise_p.size * 4
                       + Bp * LANES * 4,
    )
    kernel = functools.partial(actor_train_kernel, action_dim=A)
    slab = pl.pallas_call(
        kernel,
        out_shape=jax.ShapeDtypeStruct((Bp, LANES), jnp.float32),
        grid=grid,
        in_specs=[row(S), pinned(w1), pinned(b1), pinned(w2), pinned(b2),
                  pinned(w3h), pinned(b3h), row(A)],
        out_specs=row(LANES),
        scratch_shapes=[pltpu.VMEM((TB, LANES), jnp.float32)],
        compiler_params=pltpu.CompilerParams(dimension_semantics=("parallel",)),
        cost_estimate=cost,
    )(obs_p, w1, b1, w2, b2, w3h, b3h, noise_p)
    return slab[:B, :A], slab[:B, A:A + 1]


@functools.partial(jax.jit, static_argnames=("action_dim", "batch_tile"))
def _forward_eval(obs, w1, b1, w2, b2, w3m, b3m, *, action_dim, batch_tile):
    A = action_dim
    B, S = obs.shape
    LANES = w3m.shape[1]
    H1, H2 = w1.shape[1], w2.shape[1]
    Bp, TB, grid = _pick_tiles(B, batch_tile)

    obs_p = jnp.pad(obs, ((0, Bp - B), (0, 0))).astype(jnp.bfloat16)

    pinned = lambda arr: pl.BlockSpec(arr.shape, lambda i: (0, 0))
    row = lambda cols: pl.BlockSpec((TB, cols), lambda i: (i, 0))

    weight_bytes = ((w1.size + w2.size + w3m.size) * 2
                    + (b1.size + b2.size + b3m.size) * 4)
    cost = pl.CostEstimate(
        flops=2 * Bp * (S * H1 + H1 * H2 + H2 * LANES),
        transcendentals=Bp * LANES,
        bytes_accessed=weight_bytes + obs_p.size * 2 + Bp * LANES * 4,
    )
    slab = pl.pallas_call(
        actor_eval_kernel,
        out_shape=jax.ShapeDtypeStruct((Bp, LANES), jnp.float32),
        grid=grid,
        in_specs=[row(S), pinned(w1), pinned(b1), pinned(w2), pinned(b2),
                  pinned(w3m), pinned(b3m)],
        out_specs=row(LANES),
        compiler_params=pltpu.CompilerParams(dimension_semantics=("parallel",)),
        cost_estimate=cost,
    )(obs_p, w1, b1, w2, b2, w3m, b3m)
    return slab[:B, :A]


# ----------------------------------------------------------------- wrapper

def actor_forward(obs, params, noise=None, training=True, key=None, batch_tile=2048):
    """Returns (action, log_prob). log_prob is None when training=False.

    For best performance call prepare_actor_params(params) once and reuse the
    prepared dict (actor_forward accepts either raw or prepared params).
    """
    p = prepare_actor_params(params)
    A = p["action_dim"]
    obs = jnp.asarray(obs, jnp.float32)
    B = obs.shape[0]

    if training:
        if noise is None:
            # TanhNormal.rsample(): draw standard-normal noise (deterministic key
            # fallback keeps the script self-contained).
            key = jax.random.PRNGKey(0) if key is None else key
            noise = jax.random.normal(key, (B, A), jnp.float32)
        noise = jnp.asarray(noise, jnp.float32)
        return _forward_train(obs, noise, p["w1"], p["b1"], p["w2"], p["b2"],
                              p["w3h"], p["b3h"],
                              action_dim=A, batch_tile=batch_tile)

    action = _forward_eval(obs, p["w1"], p["b1"], p["w2"], p["b2"],
                           p["w3m"], p["b3m"],
                           action_dim=A, batch_tile=batch_tile)
    return action, None


# --------------------------------------------------------------- reference

def actor_reference(obs, params, noise, training=True):
    """Pure-JAX reference with the same bf16-matmul / f32-accumulate precision."""
    f32, bf16 = jnp.float32, jnp.bfloat16
    A = params["w3"].shape[1] // 2
    h = jnp.asarray(obs, f32).astype(bf16)
    h = jnp.maximum(jnp.dot(h, params["w1"].astype(bf16),
                            preferred_element_type=f32) + params["b1"], 0.0)
    h = jnp.maximum(jnp.dot(h.astype(bf16), params["w2"].astype(bf16),
                            preferred_element_type=f32) + params["b2"], 0.0)
    out = jnp.dot(h.astype(bf16), params["w3"].astype(bf16),
                  preferred_element_type=f32) + params["b3"]
    mean, log_std = out[:, :A], out[:, A:2 * A]
    log_std = jnp.clip(log_std, -20.0, 2.0)
    if not training:
        return jnp.tanh(mean), None
    std = jnp.exp(log_std)
    pre_tanh = mean + std * noise
    action = jnp.tanh(pre_tanh)
    normal_lp = (-0.5 * jnp.square((pre_tanh - mean) / std)
                 - log_std - 0.5 * _LOG_2PI)
    log_det = (2.0 * _LOG2 + jax.nn.log_sigmoid(2.0 * pre_tanh)
               + jax.nn.log_sigmoid(-2.0 * pre_tanh))
    lp = jnp.sum(normal_lp - log_det, axis=1, keepdims=True)
    return action, lp


# ------------------------------------------------------------------- init

def init_actor_params(key, state_dim, action_dim, hidden_sizes=(256, 256)):
    """Deterministic init mimicking torch.nn.Linear (uniform +-1/sqrt(fan_in)).
    Weights stored [in, out]."""
    params = {}
    sizes = [state_dim] + list(hidden_sizes) + [2 * action_dim]
    keys = jax.random.split(key, 2 * (len(sizes) - 1))
    for li in range(len(sizes) - 1):
        fan_in, fan_out = sizes[li], sizes[li + 1]
        bound = 1.0 / math.sqrt(fan_in)
        wkey, bkey = keys[2 * li], keys[2 * li + 1]
        params[f"w{li + 1}"] = jax.random.uniform(
            wkey, (fan_in, fan_out), jnp.float32, -bound, bound)
        params[f"b{li + 1}"] = jax.random.uniform(
            bkey, (1, fan_out), jnp.float32, -bound, bound)
    return params


if __name__ == "__main__":
    key = jax.random.PRNGKey(0)
    pkey, okey, nkey, okey2, nkey2 = jax.random.split(key, 5)

    state_dim = 32
    action_dim = 8
    batch = 2

    params = init_actor_params(pkey, state_dim, action_dim)
    prepared = prepare_actor_params(params)        # one-time weight re-layout
    obs = jax.random.normal(okey, (batch, state_dim), jnp.float32)
    noise = jax.random.normal(nkey, (batch, action_dim), jnp.float32)

    # training-mode forward (rsample + log_prob)
    action, log_prob = actor_forward(obs, prepared, noise=noise, training=True)
    jax.block_until_ready((action, log_prob))
    assert action.shape == (batch, action_dim)
    assert log_prob.shape == (batch, 1)

    # eval-mode forward (action = tanh(mean), log_prob = None)
    action_eval, lp_none = actor_forward(obs, prepared, training=False)
    jax.block_until_ready(action_eval)
    assert lp_none is None
    assert action_eval.shape == (batch, action_dim)

    # sanity check vs. matched-precision pure-JAX reference
    ref_action, ref_lp = actor_reference(obs, params, noise, training=True)
    ref_action_eval, _ = actor_reference(obs, params, noise, training=False)
    np.testing.assert_allclose(np.asarray(action), np.asarray(ref_action),
                               rtol=2e-2, atol=2e-2)
    np.testing.assert_allclose(np.asarray(log_prob), np.asarray(ref_lp),
                               rtol=2e-2, atol=2e-2)
    np.testing.assert_allclose(np.asarray(action_eval),
                               np.asarray(ref_action_eval),
                               rtol=2e-2, atol=2e-2)

    # second check: non-aligned batch -> exercises padding + multi-tile grid
    batch2 = 33
    obs2 = jax.random.normal(okey2, (batch2, state_dim), jnp.float32)
    noise2 = jax.random.normal(nkey2, (batch2, action_dim), jnp.float32)
    a2, lp2 = actor_forward(obs2, prepared, noise=noise2, training=True)
    jax.block_until_ready((a2, lp2))
    ra2, rlp2 = actor_reference(obs2, params, noise2, training=True)
    np.testing.assert_allclose(np.asarray(a2), np.asarray(ra2), rtol=2e-2, atol=2e-2)
    np.testing.assert_allclose(np.asarray(lp2), np.asarray(rlp2), rtol=2e-2, atol=2e-2)

    print("KERNEL_OK")
</pallas_src>

<mosaic_0001>
module attributes {stable_mosaic.version = 11 : i64} {
  func.func @actor_train_kernel(%arg0: i32, %arg1: memref<16x32xbf16, #tpu.memory_space<vmem>>, %arg2: memref<32x256xbf16, #tpu.memory_space<vmem>>, %arg3: memref<1x256xf32, #tpu.memory_space<vmem>>, %arg4: memref<256x256xbf16, #tpu.memory_space<vmem>>, %arg5: memref<1x256xf32, #tpu.memory_space<vmem>>, %arg6: memref<256x256xbf16, #tpu.memory_space<vmem>>, %arg7: memref<1x256xf32, #tpu.memory_space<vmem>>, %arg8: memref<16x8xf32, #tpu.memory_space<vmem>>, %arg9: memref<16x128xf32, #tpu.memory_space<vmem>>, %arg10: memref<16x128xf32, #tpu.memory_space<vmem>>) attributes {dimension_semantics = [#tpu.dimension_semantics<parallel>], iteration_bounds = array<i64: 1>, scalar_prefetch = 0 : i64, scratch_operands = 1 : i64, tpu.core_type = #tpu.core_type<tc>, window_params = [{transform_indices = @transform_0, window_bounds = array<i64: 16, 32>}, {pipeline_mode = #tpu.pipeline_mode<synchronous>, transform_indices = @transform_1, window_bounds = array<i64: 32, 256>}, {pipeline_mode = #tpu.pipeline_mode<synchronous>, transform_indices = @transform_2, window_bounds = array<i64: 1, 256>}, {pipeline_mode = #tpu.pipeline_mode<synchronous>, transform_indices = @transform_3, window_bounds = array<i64: 256, 256>}, {pipeline_mode = #tpu.pipeline_mode<synchronous>, transform_indices = @transform_4, window_bounds = array<i64: 1, 256>}, {pipeline_mode = #tpu.pipeline_mode<synchronous>, transform_indices = @transform_5, window_bounds = array<i64: 256, 256>}, {pipeline_mode = #tpu.pipeline_mode<synchronous>, transform_indices = @transform_6, window_bounds = array<i64: 1, 256>}, {transform_indices = @transform_7, window_bounds = array<i64: 16, 8>}, {transform_indices = @transform_8, window_bounds = array<i64: 16, 128>}]} {
    %c0 = arith.constant 0 : index
    %c0_0 = arith.constant 0 : index
    %0 = vector.load %arg1[%c0, %c0_0] : memref<16x32xbf16, #tpu.memory_space<vmem>>, vector<16x32xbf16>
    %c0_1 = arith.constant 0 : index
    %c0_2 = arith.constant 0 : index
    %1 = vector.load %arg2[%c0_1, %c0_2] : memref<32x256xbf16, #tpu.memory_space<vmem>>, vector<32x256xbf16>
    %cst = arith.constant dense<0.000000e+00> : vector<16x256xf32>
    %2 = tpu.matmul %0, %1, %cst {dimension_numbers = #tpu.dot_dimension_numbers<[1], [0], [0], [1], [0, 0, 1, 1], [], []>} : vector<16x32xbf16>, vector<32x256xbf16>, vector<16x256xf32> -> vector<16x256xf32>
    %c0_3 = arith.constant 0 : index
    %c0_4 = arith.constant 0 : index
    %3 = vector.load %arg3[%c0_3, %c0_4] : memref<1x256xf32, #tpu.memory_space<vmem>>, vector<1x256xf32>
    %4 = vector.broadcast %3 : vector<1x256xf32> to vector<16x256xf32>
    %5 = arith.addf %2, %4 : vector<16x256xf32>
    %cst_5 = arith.constant 0.000000e+00 : f32
    %6 = vector.broadcast %cst_5 : f32 to vector<16x256xf32>
    %7 = arith.maximumf %5, %6 : vector<16x256xf32>
    %8 = arith.truncf %7 : vector<16x256xf32> to vector<16x256xbf16>
    %c0_6 = arith.constant 0 : index
    %c0_7 = arith.constant 0 : index
    %9 = vector.load %arg4[%c0_6, %c0_7] : memref<256x256xbf16, #tpu.memory_space<vmem>>, vector<256x256xbf16>
    %cst_8 = arith.constant dense<0.000000e+00> : vector<16x256xf32>
    %10 = tpu.matmul %8, %9, %cst_8 {dimension_numbers = #tpu.dot_dimension_numbers<[1], [0], [0], [1], [0, 0, 1, 1], [], []>} : vector<16x256xbf16>, vector<256x256xbf16>, vector<16x256xf32> -> vector<16x256xf32>
    %c0_9 = arith.constant 0 : index
    %c0_10 = arith.constant 0 : index
    %11 = vector.load %arg5[%c0_9, %c0_10] : memref<1x256xf32, #tpu.memory_space<vmem>>, vector<1x256xf32>
    %12 = vector.broadcast %11 : vector<1x256xf32> to vector<16x256xf32>
    %13 = arith.addf %10, %12 : vector<16x256xf32>
    %cst_11 = arith.constant 0.000000e+00 : f32
    %14 = vector.broadcast %cst_11 : f32 to vector<16x256xf32>
    %15 = arith.maximumf %13, %14 : vector<16x256xf32>
    %16 = arith.truncf %15 : vector<16x256xf32> to vector<16x256xbf16>
    %c0_12 = arith.constant 0 : index
    %c0_13 = arith.constant 0 : index
    %17 = vector.load %arg6[%c0_12, %c0_13] : memref<256x256xbf16, #tpu.memory_space<vmem>>, vector<256x256xbf16>
    %cst_14 = arith.constant dense<0.000000e+00> : vector<16x256xf32>
    %18 = tpu.matmul %16, %17, %cst_14 {dimension_numbers = #tpu.dot_dimension_numbers<[1], [0], [0], [1], [0, 0, 1, 1], [], []>} : vector<16x256xbf16>, vector<256x256xbf16>, vector<16x256xf32> -> vector<16x256xf32>
    %c0_15 = arith.constant 0 : index
    %c0_16 = arith.constant 0 : index
    %19 = vector.load %arg7[%c0_15, %c0_16] : memref<1x256xf32, #tpu.memory_space<vmem>>, vector<1x256xf32>
    %20 = vector.broadcast %19 : vector<1x256xf32> to vector<16x256xf32>
    %21 = arith.addf %18, %20 : vector<16x256xf32>
    %22 = vector.extract_strided_slice %21 {offsets = [0, 0], sizes = [16, 128], strides = [1, 1]} : vector<16x256xf32> to vector<16x128xf32>
    %23 = vector.extract_strided_slice %21 {offsets = [0, 128], sizes = [16, 128], strides = [1, 1]} : vector<16x256xf32> to vector<16x128xf32>
    %cst_17 = arith.constant -2.000000e+01 : f32
    %cst_18 = arith.constant 2.000000e+00 : f32
    %24 = vector.broadcast %cst_17 : f32 to vector<16x128xf32>
    %25 = arith.maximumf %24, %23 : vector<16x128xf32>
    %26 = vector.broadcast %cst_18 : f32 to vector<16x128xf32>
    %27 = arith.minimumf %26, %25 : vector<16x128xf32>
    %28 = math.exp %27 : vector<16x128xf32>
    %cst_19 = arith.constant 0.000000e+00 : f32
    %29 = vector.broadcast %cst_19 : f32 to vector<16x128xf32>
    %c0_20 = arith.constant 0 : index
    %c0_21 = arith.constant 0 : index
    %30 = vector.load %arg10[%c0_20, %c0_21] : memref<16x128xf32, #tpu.memory_space<vmem>>, vector<16x128xf32>
    tpu.vector_store %arg10[%c0_20, %c0_21], %29 {strides = array<i32>} : memref<16x128xf32, #tpu.memory_space<vmem>>, vector<16x128xf32>,
    %c0_22 = arith.constant 0 : index
    %c0_23 = arith.constant 0 : index
    %31 = vector.load %arg8[%c0_22, %c0_23] : memref<16x8xf32, #tpu.memory_space<vmem>>, vector<16x8xf32>
    %c0_24 = arith.constant 0 : index
    %c0_25 = arith.constant 0 : index
    %32 = vector.load %arg10[%c0_24, %c0_25] : memref<16x128xf32, #tpu.memory_space<vmem>>, vector<16x8xf32>
    tpu.vector_store %arg10[%c0_24, %c0_25], %31 {strides = array<i32>} : memref<16x128xf32, #tpu.memory_space<vmem>>, vector<16x8xf32>,
    %c0_26 = arith.constant 0 : index
    %c0_27 = arith.constant 0 : index
    %33 = vector.load %arg10[%c0_26, %c0_27] : memref<16x128xf32, #tpu.memory_space<vmem>>, vector<16x128xf32>
    %34 = arith.mulf %28, %33 : vector<16x128xf32>
    %35 = arith.addf %22, %34 : vector<16x128xf32>
    %36 = math.tanh %35 : vector<16x128xf32>
    %cst_28 = arith.constant -5.000000e-01 : f32
    %37 = vector.broadcast %cst_28 : f32 to vector<16x128xf32>
    %38 = arith.mulf %37, %33 : vector<16x128xf32>
    %39 = arith.mulf %38, %33 : vector<16x128xf32>
    %40 = arith.subf %39, %27 : vector<16x128xf32>
    %cst_29 = arith.constant 0.918938517 : f32
    %41 = vector.broadcast %cst_29 : f32 to vector<16x128xf32>
    %42 = arith.subf %40, %41 : vector<16x128xf32>
    %cst_30 = arith.constant -2.000000e+00 : f32
    %43 = vector.broadcast %cst_30 : f32 to vector<16x128xf32>
    %44 = arith.mulf %43, %35 : vector<16x128xf32>
    %cst_31 = arith.constant 0.000000e+00 : f32
    %45 = vector.broadcast %cst_31 : f32 to vector<16x128xf32>
    %46 = arith.maximumf %44, %45 : vector<16x128xf32>
    %47 = math.absf %44 : vector<16x128xf32>
    %cst_32 = arith.constant 0.000000e+00 : f32
    %48 = vector.broadcast %cst_32 : f32 to vector<16x128xf32>
    %49 = arith.subf %48, %47 : vector<16x128xf32>
    %50 = math.exp %49 : vector<16x128xf32>
    %51 = math.log1p %50 : vector<16x128xf32>
    %52 = arith.addf %46, %51 : vector<16x128xf32>
    %cst_33 = arith.constant 0.693147182 : f32
    %53 = vector.broadcast %cst_33 : f32 to vector<16x128xf32>
    %54 = arith.subf %53, %35 : vector<16x128xf32>
    %55 = arith.subf %54, %52 : vector<16x128xf32>
    %cst_34 = arith.constant 2.000000e+00 : f32
    %56 = vector.broadcast %cst_34 : f32 to vector<16x128xf32>
    %57 = arith.mulf %56, %55 : vector<16x128xf32>
    %58 = arith.subf %42, %57 : vector<16x128xf32>
    %59 = tpu.iota {dimensions = array<i32: 1>} : vector<16x128xi32>
    %c8_i32 = arith.constant 8 : i32
    %60 = vector.broadcast %c8_i32 : i32 to vector<16x128xi32>
    %61 = arith.cmpi slt, %59, %60 : vector<16x128xi32>
    %cst_35 = arith.constant 0.000000e+00 : f32
    %62 = vector.broadcast %cst_35 : f32 to vector<16x128xf32>
    %63 = arith.select %61, %58, %62 : vector<16x128xi1>, vector<16x128xf32>
    %cst_36 = arith.constant dense<0.000000e+00> : vector<16xf32>
    %64 = vector.multi_reduction <add>, %63, %cst_36 [1] : vector<16x128xf32> to vector<16xf32>
    %65 = vector.shape_cast %64 : vector<16xf32> to vector<16x1xf32>
    %cst_37 = arith.constant 0.000000e+00 : f32
    %66 = vector.broadcast %cst_37 : f32 to vector<16x128xf32>
    %67 = arith.select %61, %36, %66 : vector<16x128xi1>, vector<16x128xf32>
    %c8_i32_38 = arith.constant 8 : i32
    %68 = vector.broadcast %c8_i32_38 : i32 to vector<16x128xi32>
    %69 = arith.cmpi eq, %59, %68 : vector<16x128xi32>
    %70 = vector.shape_cast %65 : vector<16x1xf32> to vector<16x1xf32>
    %71 = vector.broadcast %70 : vector<16x1xf32> to vector<16x128xf32>
    %72 = arith.select %69, %71, %67 : vector<16x128xi1>, vector<16x128xf32>
    %c0_39 = arith.constant 0 : index
    %c0_40 = arith.constant 0 : index
    %73 = vector.load %arg9[%c0_39, %c0_40] : memref<16x128xf32, #tpu.memory_space<vmem>>, vector<16x128xf32>
    tpu.vector_store %arg9[%c0_39, %c0_40], %72 {strides = array<i32>} : memref<16x128xf32, #tpu.memory_space<vmem>>, vector<16x128xf32>,
    return
  }
  func.func @transform_0(%arg0: i32) -> (i32, i32) {
    %c0_i32 = arith.constant 0 : i32
    %c0_i32_0 = arith.constant 0 : i32
    return %arg0, %c0_i32 : i32, i32
  }
  func.func @transform_1(%arg0: i32) -> (i32, i32) {
    %c0_i32 = arith.constant 0 : i32
    %c0_i32_0 = arith.constant 0 : i32
    %c0_i32_1 = arith.constant 0 : i32
    return %c0_i32, %c0_i32_0 : i32, i32
  }
  func.func @transform_2(%arg0: i32) -> (i32, i32) {
    %c0_i32 = arith.constant 0 : i32
    %c0_i32_0 = arith.constant 0 : i32
    %c0_i32_1 = arith.constant 0 : i32
    return %c0_i32, %c0_i32_0 : i32, i32
  }
  func.func @transform_3(%arg0: i32) -> (i32, i32) {
    %c0_i32 = arith.constant 0 : i32
    %c0_i32_0 = arith.constant 0 : i32
    %c0_i32_1 = arith.constant 0 : i32
    return %c0_i32, %c0_i32_0 : i32, i32
  }
  func.func @transform_4(%arg0: i32) -> (i32, i32) {
    %c0_i32 = arith.constant 0 : i32
    %c0_i32_0 = arith.constant 0 : i32
    %c0_i32_1 = arith.constant 0 : i32
    return %c0_i32, %c0_i32_0 : i32, i32
  }
  func.func @transform_5(%arg0: i32) -> (i32, i32) {
    %c0_i32 = arith.constant 0 : i32
    %c0_i32_0 = arith.constant 0 : i32
    %c0_i32_1 = arith.constant 0 : i32
    return %c0_i32, %c0_i32_0 : i32, i32
  }
  func.func @transform_6(%arg0: i32) -> (i32, i32) {
    %c0_i32 = arith.constant 0 : i32
    %c0_i32_0 = arith.constant 0 : i32
    %c0_i32_1 = arith.constant 0 : i32
    return %c0_i32, %c0_i32_0 : i32, i32
  }
  func.func @transform_7(%arg0: i32) -> (i32, i32) {
    %c0_i32 = arith.constant 0 : i32
    %c0_i32_0 = arith.constant 0 : i32
    return %arg0, %c0_i32 : i32, i32
  }
  func.func @transform_8(%arg0: i32) -> (i32, i32) {
    %c0_i32 = arith.constant 0 : i32
    %c0_i32_0 = arith.constant 0 : i32
    return %arg0, %c0_i32 : i32, i32
  }
}

</mosaic_0001>

<llo_original>
// kernel: _forward_train.1
$region0: #{_forward_train.1}
  #allocation0 [shape = 'u32[]', space=smem, size = 0x4, offset = 0x4, fixed_abs, tag = 'smem constant byte address 0x4 - core index']
  #allocation1 [shape = 'u32[144,128]{1,0:T(1,128)}', space=vmem, size = 0x12000, scoped, tag = 'internal scratch']
  #allocation2 [shape = 'f32[16,128]{1,0:T(8,128)}', space=vmem, size = 0x2000, scoped, tag = 'scratch operand']
  %s0 = inlined_call_operand.vmem [shape: bf16[16,32], index: 0, kind: input, shape index: {}]
  %s1 = inlined_call_operand.vmem [shape: bf16[32,256], index: 1, kind: input, shape index: {}]
  %s2 = inlined_call_operand.vmem [shape: f32[1,256], index: 2, kind: input, shape index: {}]
  %s3 = inlined_call_operand.hbm [shape: bf16[256,256], index: 3, kind: input, shape index: {}]
  %s4 = inlined_call_operand.vmem [shape: f32[1,256], index: 4, kind: input, shape index: {}]
  %s5 = inlined_call_operand.hbm [shape: bf16[256,256], index: 5, kind: input, shape index: {}]
  %s6 = inlined_call_operand.vmem [shape: f32[1,256], index: 6, kind: input, shape index: {}]
  %s7 = inlined_call_operand.vmem [shape: f32[16,8], index: 7, kind: input, shape index: {}]
  %s8 = inlined_call_operand.vmem [shape: f32[16,128], index: 8, kind: output, shape index: {}]
  %s9 = sld [smem:[#allocation0]]
  $region50: #{_forward_train.1} parent=0
    _
  %s11 = ssub.s32 1, %s9
  %s12 = scalar_select 0, %s11, %s9
  $region1: #{_forward_train.1} parent=0
    #allocation3 [shape = 'u8[131072]{0}', space=vmem, size = 0x20000, scoped, tag = 'input window, operand 3, single buffered']
    #allocation4 [shape = 's32[1]{0}', space=sflag, size = 0x4, scoped, tag = 'scoped memory for _forward_train.1']
    #allocation5 [shape = 'u8[131072]{0}', space=vmem, size = 0x20000, scoped, tag = 'input window, operand 5, single buffered']
    #allocation6 [shape = 's32[1]{0}', space=sflag, size = 0x4, scoped, tag = 'scoped memory for _forward_train.1']
    %13 = vsyncpa [#allocation4], 0
    %14 = vsyncpa [#allocation6], 0
    // Predicated region
    $region2: #{_forward_train.1} parent=1 // pred_check
      _
    $region3: #{_forward_train.1} parent=1 // pred_check_branch
      %16 = sbr.rel (0) target = $region5
    $region4: #{_forward_train.1} parent=1 // pred_region
      _
    $region5: #{_forward_train.1} parent=1 // pred_fallthru
      _
    // Predicated region
    $region6: #{_forward_train.1} parent=1 // pred_check
      _
    $region7: #{_forward_train.1} parent=1 // pred_check_branch
      %18 = sbr.rel (0) target = $region9
    $region8: #{_forward_train.1} parent=1 // pred_region
      _
    $region9: #{_forward_train.1} parent=1 // pred_fallthru
      _
    // Predicated region
    $region10: #{_forward_train.1} parent=1 // pred_check
      _
    $region11: #{_forward_train.1} parent=1 // pred_check_branch
      %20 = sbr.rel (0) target = $region13
    $region12: #{_forward_train.1} parent=1 // pred_region
      _
    $region13: #{_forward_train.1} parent=1 // pred_fallthru
      _
    // Predicated region
    $region14: #{_forward_train.1} parent=1 // pred_check
      _
    $region15: #{_forward_train.1} parent=1 // pred_check_branch
      %22 = sbr.rel (0) target = $region17
    $region16: #{_forward_train.1} parent=1 // pred_region
      %s24 = ssub.s32 4096, 4096
      %25 = vsyncadd [#allocation4], %s24
      %s26 = sshll.u32 [#allocation3], 4
      %s27 = int_to_ptr.vmem [resolvable:$true] %s26
      %32 = dma.hbm_to_vmem [thread:$0]  %s3, 4096, %s27, [#allocation4], 128, 128, 8
    $region17: #{_forward_train.1} parent=1 // pred_fallthru
      _
    // Predicated region
    $region18: #{_forward_train.1} parent=1 // pred_check
      _
    $region19: #{_forward_train.1} parent=1 // pred_check_branch
      %34 = sbr.rel (0) target = $region21
    $region20: #{_forward_train.1} parent=1 // pred_region
      _
    $region21: #{_forward_train.1} parent=1 // pred_fallthru
      _
    // Predicated region
    $region22: #{_forward_train.1} parent=1 // pred_check
      _
    $region23: #{_forward_train.1} parent=1 // pred_check_branch
      %36 = sbr.rel (0) target = $region25
    $region24: #{_forward_train.1} parent=1 // pred_region
      %s38 = ssub.s32 4096, 4096
      %39 = vsyncadd [#allocation6], %s38
      %s40 = sshll.u32 [#allocation5], 4
      %s41 = int_to_ptr.vmem [resolvable:$true] %s40
      %46 = dma.hbm_to_vmem [thread:$0]  %s5, 4096, %s41, [#allocation6], 128, 128, 8
    $region25: #{_forward_train.1} parent=1 // pred_fallthru
      _
    // Predicated region
    $region26: #{_forward_train.1} parent=1 // pred_check
      _
    $region27: #{_forward_train.1} parent=1 // pred_check_branch
      %48 = sbr.rel (0) target = $region29
    $region28: #{_forward_train.1} parent=1 // pred_region
      _
    $region29: #{_forward_train.1} parent=1 // pred_fallthru
      _
    // Predicated region
    $region30: #{_forward_train.1} parent=1 // pred_check
      _
    $region31: #{_forward_train.1} parent=1 // pred_check_branch
      %50 = sbr.rel (0) target = $region33
    $region32: #{_forward_train.1} parent=1 // pred_region
      _
    $region33: #{_forward_train.1} parent=1 // pred_fallthru
      _
    // Predicated region
    $region34: #{_forward_train.1} parent=1 // pred_check
      _
    $region35: #{_forward_train.1} parent=1 // pred_check_branch
      %52 = sbr.rel (0) target = $region37
    $region36: #{_forward_train.1} parent=1 // pred_region
      %53 = dma.done [#allocation4], 4096
    $region37: #{_forward_train.1} parent=1 // pred_fallthru
      _
    // Predicated region
    $region38: #{_forward_train.1} parent=1 // pred_check
      _
    $region39: #{_forward_train.1} parent=1 // pred_check_branch
      %55 = sbr.rel (0) target = $region41
    $region40: #{_forward_train.1} parent=1 // pred_region
      %56 = dma.done [#allocation6], 4096
    $region41: #{_forward_train.1} parent=1 // pred_fallthru
      _
    %v58 = vld [vmem:[%s0] sm:$0xf]
    %v59 = vld [vmem:[%s0 + $0x4] sm:$0xf]
    %v60 = vld [vmem:[%s1] sm:$0xff]
    %v61 = vld [vmem:[%s1 + $0x8] sm:$0xff]
    %v62 = vld [vmem:[%s1 + $0x10] sm:$0xff]
    %v63 = vld [vmem:[%s1 + $0x18] sm:$0xff]
    %v64 = vld [vmem:[%s2] sm:$0x3]
    %v66 = vlaneseq
    %v67 = vshrl.u32 %v66, 7
    %v68 = vsub.s32 0, %v67
    %v69 = vrot.slane %v64, %v68
    %v70 = vlaneseq
    %v71 = vshrl.u32 %v70, 7
    %v72 = vsub.s32 1, %v71
    %v73 = vrot.slane %v64, %v72
    %v78 = vunpack.c.l.b16 %v58
    %v79 = vunpack.c.l.b16 %v59
    %v80 = vpack.c.b16 %v79, %v78
    %v85 = vunpack.c.l.b16 %v60
    %v86 = vunpack.c.h.b16 %v60
    %v87 = vunpack.c.l.b16 %v61
    %v88 = vunpack.c.h.b16 %v61
    %v89 = vunpack.c.l.b16 %v62
    %v90 = vunpack.c.h.b16 %v62
    %v91 = vunpack.c.l.b16 %v63
    %v92 = vunpack.c.h.b16 %v63
    %v93 = vpack.c.b16 %v87, %v85
    %v94 = vpack.c.b16 %v88, %v86
    %v95 = vpack.c.b16 %v91, %v89
    %v96 = vpack.c.b16 %v92, %v90
    %vm101 = vcmask 261120
    %v103 = vsel %vm101, %v80, 0
    %105 = vmatprep.subr.bf16.mxu0 %v94
    %106 = vmatpush1.bf16.msra.mxu0 %v93
    %107 = vmatprep.subr.bf16.mxu0 %v96
    %108 = vmatpush1.bf16.msra.mxu0 %v95
    %109 = vmatprep.subr.bf16.mxu0 0
    %110 = vmatpush1.bf16.msra.mxu0 0
    %111 = vmatprep.subr.bf16.mxu0 0
    %112 = vmatpush1.bf16.msra.mxu0 0
    %113 = vmatprep.subr.bf16.mxu0 0
    %114 = vmatpush1.bf16.msra.mxu0 0
    %115 = vmatprep.subr.bf16.mxu0 0
    %116 = vmatpush1.bf16.msra.mxu0 0
    %117 = vmatprep.subr.bf16.mxu0 0
    %118 = vmatpush1.bf16.msra.mxu0 0
    %119 = vmatprep.subr.bf16.mxu0 0
    %120 = vmatpush1.bf16.msra.mxu0 0
    %121 = vmatprep.subr.bf16.mxu0 0
    %122 = vmatpush1.bf16.msra.mxu0 0
    %123 = vmatprep.subr.bf16.mxu0 0
    %124 = vmatpush1.bf16.msra.mxu0 0
    %125 = vmatprep.subr.bf16.mxu0 0
    %126 = vmatpush1.bf16.msra.mxu0 0
    %127 = vmatprep.subr.bf16.mxu0 0
    %128 = vmatpush1.bf16.msra.mxu0 0
    %129 = vmatprep.subr.bf16.mxu0 0
    %130 = vmatpush1.bf16.msra.mxu0 0
    %131 = vmatprep.subr.bf16.mxu0 0
    %132 = vmatpush1.bf16.msra.mxu0 0
    %133 = vmatprep.subr.bf16.mxu0 0
    %134 = vmatpush1.bf16.msra.mxu0 0
    %135 = vmatprep.subr.bf16.mxu0 0
    %136 = vmatpush1.bf16.msra.mxu0 0
    %137 = vmatprep.mubr.bf16.mxu0 0
    %138 = vmatmul.mubr.bf16.gmra.mrb[0].mxu0 %v103
    %v139 = vpop.f32.mrb[0].mxu0
    %v140 = vadd.f32 %v69, %v139
    %v141 = vpop.f32.mrb[0].mxu0
    %v142 = vadd.f32 %v73, %v141
    %v143 = vpop.f32.mrb[0].mxu0
    %v144 = vadd.f32 %v69, %v143
    %v145 = vpop.f32.mrb[0].mxu0
    %v146 = vadd.f32 %v73, %v145
    %147 = vdwg.mxu0
    %v148 = vmax.f32 %v140, 0.0
    %v149 = vmax.f32 %v142, 0.0
    %v150 = vmax.f32 %v144, 0.0
    %v151 = vmax.f32 %v146, 0.0
    %v152 = vpack.c.bf16 %v150, %v148
    %v153 = vpack.c.bf16 %v151, %v149
    %v154 = vld [vmem:[#allocation3] sm:$0xff]
    %v155 = vld [vmem:[#allocation3 + $0x8] sm:$0xff]
    %v156 = vld [vmem:[#allocation3 + $0x10] sm:$0xff]
    %v157 = vld [vmem:[#allocation3 + $0x18] sm:$0xff]
    %v158 = vld [vmem:[#allocation3 + $0x20] sm:$0xff]
    %v159 = vld [vmem:[#allocation3 + $0x28] sm:$0xff]
    %v160 = vld [vmem:[#allocation3 + $0x30] sm:$0xff]
    %v161 = vld [vmem:[#allocation3 + $0x38] sm:$0xff]
    %v162 = vld [vmem:[#allocation3 + $0x40] sm:$0xff]
    %v163 = vld [vmem:[#allocation3 + $0x48] sm:$0xff]
    %v164 = vld [vmem:[#allocation3 + $0x50] sm:$0xff]
    %v165 = vld [vmem:[#allocation3 + $0x58] sm:$0xff]
    %v166 = vld [vmem:[#allocation3 + $0x60] sm:$0xff]
    %v167 = vld [vmem:[#allocation3 + $0x68] sm:$0xff]
    %v168 = vld [vmem:[#allocation3 + $0x70] sm:$0xff]
    %v169 = vld [vmem:[#allocation3 + $0x78] sm:$0xff]
    %v170 = vld [vmem:[#allocation3 + $0x80] sm:$0xff]
    %v171 = vld [vmem:[#allocation3 + $0x88] sm:$0xff]
    %v172 = vld [vmem:[#allocation3 + $0x90] sm:$0xff]
    %v173 = vld [vmem:[#allocation3 + $0x98] sm:$0xff]
    %v174 = vld [vmem:[#allocation3 + $0xa0] sm:$0xff]
    %v175 = vld [vmem:[#allocation3 + $0xa8] sm:$0xff]
    %v176 = vld [vmem:[#allocation3 + $0xb0] sm:$0xff]
    %v177 = vld [vmem:[#allocation3 + $0xb8] sm:$0xff]
    %v178 = vld [vmem:[#allocation3 + $0xc0] sm:$0xff]
    %v179 = vld [vmem:[#allocation3 + $0xc8] sm:$0xff]
    %v180 = vld [vmem:[#allocation3 + $0xd0] sm:$0xff]
    %v181 = vld [vmem:[#allocation3 + $0xd8] sm:$0xff]
    %v182 = vld [vmem:[#allocation3 + $0xe0] sm:$0xff]
    %v183 = vld [vmem:[#allocation3 + $0xe8] sm:$0xff]
    %v184 = vld [vmem:[#allocation3 + $0xf0] sm:$0xff]
    %v185 = vld [vmem:[#allocation3 + $0xf8] sm:$0xff]
    %v186 = vld [vmem:[%s4] sm:$0x3]
    %v188 = vlaneseq
    %v189 = vshrl.u32 %v188, 7
    %v190 = vsub.s32 0, %v189
    %v191 = vrot.slane %v186, %v190
    %v192 = vlaneseq
    %v193 = vshrl.u32 %v192, 7
    %v194 = vsub.s32 1, %v193
    %v195 = vrot.slane %v186, %v194
    %v230 = vunpack.c.l.b16 %v154
    %v231 = vunpack.c.h.b16 %v154
    %v232 = vunpack.c.l.b16 %v155
    %v233 = vunpack.c.h.b16 %v155
    %v234 = vunpack.c.l.b16 %v156
    %v235 = vunpack.c.h.b16 %v156
    %v236 = vunpack.c.l.b16 %v157
    %v237 = vunpack.c.h.b16 %v157
    %v238 = vunpack.c.l.b16 %v158
    %v239 = vunpack.c.h.b16 %v158
    %v240 = vunpack.c.l.b16 %v159
    %v241 = vunpack.c.h.b16 %v159
    %v242 = vunpack.c.l.b16 %v160
    %v243 = vunpack.c.h.b16 %v160
    %v244 = vunpack.c.l.b16 %v161
    %v245 = vunpack.c.h.b16 %v161
    %v246 = vunpack.c.l.b16 %v162
    %v247 = vunpack.c.h.b16 %v162
    %v248 = vunpack.c.l.b16 %v163
    %v249 = vunpack.c.h.b16 %v163
    %v250 = vunpack.c.l.b16 %v164
    %v251 = vunpack.c.h.b16 %v164
    %v252 = vunpack.c.l.b16 %v165
    %v253 = vunpack.c.h.b16 %v165
    %v254 = vunpack.c.l.b16 %v166
    %v255 = vunpack.c.h.b16 %v166
    %v256 = vunpack.c.l.b16 %v167
    %v257 = vunpack.c.h.b16 %v167
    %v258 = vunpack.c.l.b16 %v168
    %v259 = vunpack.c.h.b16 %v168
    %v260 = vunpack.c.l.b16 %v169
    %v261 = vunpack.c.h.b16 %v169
    %v262 = vunpack.c.l.b16 %v170
    %v263 = vunpack.c.h.b16 %v170
    %v264 = vunpack.c.l.b16 %v171
    %v265 = vunpack.c.h.b16 %v171
    %v266 = vunpack.c.l.b16 %v172
    %v267 = vunpack.c.h.b16 %v172
    %v268 = vunpack.c.l.b16 %v173
    %v269 = vunpack.c.h.b16 %v173
    %v270 = vunpack.c.l.b16 %v174
    %v271 = vunpack.c.h.b16 %v174
    %v272 = vunpack.c.l.b16 %v175
    %v273 = vunpack.c.h.b16 %v175
    %v274 = vunpack.c.l.b16 %v176
    %v275 = vunpack.c.h.b16 %v176
    %v276 = vunpack.c.l.b16 %v177
    %v277 = vunpack.c.h.b16 %v177
    %v278 = vunpack.c.l.b16 %v178
    %v279 = vunpack.c.h.b16 %v178
    %v280 = vunpack.c.l.b16 %v179
    %v281 = vunpack.c.h.b16 %v179
    %v282 = vunpack.c.l.b16 %v180
    %v283 = vunpack.c.h.b16 %v180
    %v284 = vunpack.c.l.b16 %v181
    %v285 = vunpack.c.h.b16 %v181
    %v286 = vunpack.c.l.b16 %v182
    %v287 = vunpack.c.h.b16 %v182
    %v288 = vunpack.c.l.b16 %v183
    %v289 = vunpack.c.h.b16 %v183
    %v290 = vunpack.c.l.b16 %v184
    %v291 = vunpack.c.h.b16 %v184
    %v292 = vunpack.c.l.b16 %v185
    %v293 = vunpack.c.h.b16 %v185
    %v294 = vpack.c.b16 %v232, %v230
    %v295 = vpack.c.b16 %v233, %v231
    %v296 = vpack.c.b16 %v236, %v234
    %v297 = vpack.c.b16 %v237, %v235
    %v298 = vpack.c.b16 %v240, %v238
    %v299 = vpack.c.b16 %v241, %v239
    %v300 = vpack.c.b16 %v244, %v242
    %v301 = vpack.c.b16 %v245, %v243
    %v302 = vpack.c.b16 %v248, %v246
    %v303 = vpack.c.b16 %v249, %v247
    %v304 = vpack.c.b16 %v252, %v250
    %v305 = vpack.c.b16 %v253, %v251
    %v306 = vpack.c.b16 %v256, %v254
    %v307 = vpack.c.b16 %v257, %v255
    %v308 = vpack.c.b16 %v260, %v258
    %v309 = vpack.c.b16 %v261, %v259
    %v310 = vpack.c.b16 %v264, %v262
    %v311 = vpack.c.b16 %v265, %v263
    %v312 = vpack.c.b16 %v268, %v266
    %v313 = vpack.c.b16 %v269, %v267
    %v314 = vpack.c.b16 %v272, %v270
    %v315 = vpack.c.b16 %v273, %v271
    %v316 = vpack.c.b16 %v276, %v274
    %v317 = vpack.c.b16 %v277, %v275
    %v318 = vpack.c.b16 %v280, %v278
    %v319 = vpack.c.b16 %v281, %v279
    %v320 = vpack.c.b16 %v284, %v282
    %v321 = vpack.c.b16 %v285, %v283
    %v322 = vpack.c.b16 %v288, %v286
    %v323 = vpack.c.b16 %v289, %v287
    %v324 = vpack.c.b16 %v292, %v290
    %v325 = vpack.c.b16 %v293, %v291
    %358 = vmatprep.subr.bf16.mxu0 %v295
    %359 = vmatpush1.bf16.msra.mxu0 %v294
    %360 = vmatprep.subr.bf16.mxu0 %v297
    %361 = vmatpush1.bf16.msra.mxu0 %v296
    %362 = vmatprep.subr.bf16.mxu0 %v299
    %363 = vmatpush1.bf16.msra.mxu0 %v298
    %364 = vmatprep.subr.bf16.mxu0 %v301
    %365 = vmatpush1.bf16.msra.mxu0 %v300
    %366 = vmatprep.subr.bf16.mxu0 %v303
    %367 = vmatpush1.bf16.msra.mxu0 %v302
    %368 = vmatprep.subr.bf16.mxu0 %v305
    %369 = vmatpush1.bf16.msra.mxu0 %v304
    %370 = vmatprep.subr.bf16.mxu0 %v307
    %371 = vmatpush1.bf16.msra.mxu0 %v306
    %372 = vmatprep.subr.bf16.mxu0 %v309
    %373 = vmatpush1.bf16.msra.mxu0 %v308
    %374 = vmatprep.subr.bf16.mxu0 %v311
    %375 = vmatpush1.bf16.msra.mxu0 %v310
    %376 = vmatprep.subr.bf16.mxu0 %v313
    %377 = vmatpush1.bf16.msra.mxu0 %v312
    %378 = vmatprep.subr.bf16.mxu0 %v315
    %379 = vmatpush1.bf16.msra.mxu0 %v314
    %380 = vmatprep.subr.bf16.mxu0 %v317
    %381 = vmatpush1.bf16.msra.mxu0 %v316
    %382 = vmatprep.subr.bf16.mxu0 %v319
    %383 = vmatpush1.bf16.msra.mxu0 %v318
    %384 = vmatprep.subr.bf16.mxu0 %v321
    %385 = vmatpush1.bf16.msra.mxu0 %v320
    %386 = vmatprep.subr.bf16.mxu0 %v323
    %387 = vmatpush1.bf16.msra.mxu0 %v322
    %388 = vmatprep.subr.bf16.mxu0 %v325
    %389 = vmatpush1.bf16.msra.mxu0 %v324
    %390 = vmatprep.mubr.bf16.mxu0 %v153
    %391 = vmatmul.mubr.bf16.gmra.mrb[0].mxu0 %v152
    %v392 = vpop.f32.mrb[0].mxu0
    %v393 = vadd.f32 %v191, %v392
    %v394 = vpop.f32.mrb[0].mxu0
    %v395 = vadd.f32 %v195, %v394
    %v396 = vpop.f32.mrb[0].mxu0
    %v397 = vadd.f32 %v191, %v396
    %v398 = vpop.f32.mrb[0].mxu0
    %v399 = vadd.f32 %v195, %v398
    %400 = vdwg.mxu0
    %v401 = vmax.f32 %v393, 0.0
    %v402 = vmax.f32 %v395, 0.0
    %v403 = vmax.f32 %v397, 0.0
    %v404 = vmax.f32 %v399, 0.0
    %v405 = vpack.c.bf16 %v403, %v401
    %v406 = vpack.c.bf16 %v404, %v402
    %v407 = vld [vmem:[#allocation5] sm:$0xff]
    %v408 = vld [vmem:[#allocation5 + $0x8] sm:$0xff]
    %v409 = vld [vmem:[#allocation5 + $0x10] sm:$0xff]
    %v410 = vld [vmem:[#allocation5 + $0x18] sm:$0xff]
    %v411 = vld [vmem:[#allocation5 + $0x20] sm:$0xff]
    %v412 = vld [vmem:[#allocation5 + $0x28] sm:$0xff]
    %v413 = vld [vmem:[#allocation5 + $0x30] sm:$0xff]
    %v414 = vld [vmem:[#allocation5 + $0x38] sm:$0xff]
    %v415 = vld [vmem:[#allocation5 + $0x40] sm:$0xff]
    %v416 = vld [vmem:[#allocation5 + $0x48] sm:$0xff]
    %v417 = vld [vmem:[#allocation5 + $0x50] sm:$0xff]
    %v418 = vld [vmem:[#allocation5 + $0x58] sm:$0xff]
    %v419 = vld [vmem:[#allocation5 + $0x60] sm:$0xff]
    %v420 = vld [vmem:[#allocation5 + $0x68] sm:$0xff]
    %v421 = vld [vmem:[#allocation5 + $0x70] sm:$0xff]
    %v422 = vld [vmem:[#allocation5 + $0x78] sm:$0xff]
    %v423 = vld [vmem:[#allocation5 + $0x80] sm:$0xff]
    %v424 = vld [vmem:[#allocation5 + $0x88] sm:$0xff]
    %v425 = vld [vmem:[#allocation5 + $0x90] sm:$0xff]
    %v426 = vld [vmem:[#allocation5 + $0x98] sm:$0xff]
    %v427 = vld [vmem:[#allocation5 + $0xa0] sm:$0xff]
    %v428 = vld [vmem:[#allocation5 + $0xa8] sm:$0xff]
    %v429 = vld [vmem:[#allocation5 + $0xb0] sm:$0xff]
    %v430 = vld [vmem:[#allocation5 + $0xb8] sm:$0xff]
    %v431 = vld [vmem:[#allocation5 + $0xc0] sm:$0xff]
    %v432 = vld [vmem:[#allocation5 + $0xc8] sm:$0xff]
    %v433 = vld [vmem:[#allocation5 + $0xd0] sm:$0xff]
    %v434 = vld [vmem:[#allocation5 + $0xd8] sm:$0xff]
    %v435 = vld [vmem:[#allocation5 + $0xe0] sm:$0xff]
    %v436 = vld [vmem:[#allocation5 + $0xe8] sm:$0xff]
    %v437 = vld [vmem:[#allocation5 + $0xf0] sm:$0xff]
    %v438 = vld [vmem:[#allocation5 + $0xf8] sm:$0xff]
    %v439 = vld [vmem:[%s6] sm:$0x3]
    %v441 = vlaneseq
    %v442 = vshrl.u32 %v441, 7
    %v443 = vsub.s32 0, %v442
    %v444 = vrot.slane %v439, %v443
    %v445 = vlaneseq
    %v446 = vshrl.u32 %v445, 7
    %v447 = vsub.s32 1, %v446
    %v448 = vrot.slane %v439, %v447
    %v483 = vunpack.c.l.b16 %v407
    %v484 = vunpack.c.h.b16 %v407
    %v485 = vunpack.c.l.b16 %v408
    %v486 = vunpack.c.h.b16 %v408
    %v487 = vunpack.c.l.b16 %v409
    %v488 = vunpack.c.h.b16 %v409
    %v489 = vunpack.c.l.b16 %v410
    %v490 = vunpack.c.h.b16 %v410
    %v491 = vunpack.c.l.b16 %v411
    %v492 = vunpack.c.h.b16 %v411
    %v493 = vunpack.c.l.b16 %v412
    %v494 = vunpack.c.h.b16 %v412
    %v495 = vunpack.c.l.b16 %v413
    %v496 = vunpack.c.h.b16 %v413
    %v497 = vunpack.c.l.b16 %v414
    %v498 = vunpack.c.h.b16 %v414
    %v499 = vunpack.c.l.b16 %v415
    %v500 = vunpack.c.h.b16 %v415
    %v501 = vunpack.c.l.b16 %v416
    %v502 = vunpack.c.h.b16 %v416
    %v503 = vunpack.c.l.b16 %v417
    %v504 = vunpack.c.h.b16 %v417
    %v505 = vunpack.c.l.b16 %v418
    %v506 = vunpack.c.h.b16 %v418
    %v507 = vunpack.c.l.b16 %v419
    %v508 = vunpack.c.h.b16 %v419
    %v509 = vunpack.c.l.b16 %v420
    %v510 = vunpack.c.h.b16 %v420
    %v511 = vunpack.c.l.b16 %v421
    %v512 = vunpack.c.h.b16 %v421
    %v513 = vunpack.c.l.b16 %v422
    %v514 = vunpack.c.h.b16 %v422
    %v515 = vunpack.c.l.b16 %v423
    %v516 = vunpack.c.h.b16 %v423
    %v517 = vunpack.c.l.b16 %v424
    %v518 = vunpack.c.h.b16 %v424
    %v519 = vunpack.c.l.b16 %v425
    %v520 = vunpack.c.h.b16 %v425
    %v521 = vunpack.c.l.b16 %v426
    %v522 = vunpack.c.h.b16 %v426
    %v523 = vunpack.c.l.b16 %v427
    %v524 = vunpack.c.h.b16 %v427
    %v525 = vunpack.c.l.b16 %v428
    %v526 = vunpack.c.h.b16 %v428
    %v527 = vunpack.c.l.b16 %v429
    %v528 = vunpack.c.h.b16 %v429
    %v529 = vunpack.c.l.b16 %v430
    %v530 = vunpack.c.h.b16 %v430
    %v531 = vunpack.c.l.b16 %v431
    %v532 = vunpack.c.h.b16 %v431
    %v533 = vunpack.c.l.b16 %v432
    %v534 = vunpack.c.h.b16 %v432
    %v535 = vunpack.c.l.b16 %v433
    %v536 = vunpack.c.h.b16 %v433
    %v537 = vunpack.c.l.b16 %v434
    %v538 = vunpack.c.h.b16 %v434
    %v539 = vunpack.c.l.b16 %v435
    %v540 = vunpack.c.h.b16 %v435
    %v541 = vunpack.c.l.b16 %v436
    %v542 = vunpack.c.h.b16 %v436
    %v543 = vunpack.c.l.b16 %v437
    %v544 = vunpack.c.h.b16 %v437
    %v545 = vunpack.c.l.b16 %v438
    %v546 = vunpack.c.h.b16 %v438
    %v547 = vpack.c.b16 %v485, %v483
    %v548 = vpack.c.b16 %v486, %v484
    %v549 = vpack.c.b16 %v489, %v487
    %v550 = vpack.c.b16 %v490, %v488
    %v551 = vpack.c.b16 %v493, %v491
    %v552 = vpack.c.b16 %v494, %v492
    %v553 = vpack.c.b16 %v497, %v495
    %v554 = vpack.c.b16 %v498, %v496
    %v555 = vpack.c.b16 %v501, %v499
    %v556 = vpack.c.b16 %v502, %v500
    %v557 = vpack.c.b16 %v505, %v503
    %v558 = vpack.c.b16 %v506, %v504
    %v559 = vpack.c.b16 %v509, %v507
    %v560 = vpack.c.b16 %v510, %v508
    %v561 = vpack.c.b16 %v513, %v511
    %v562 = vpack.c.b16 %v514, %v512
    %v563 = vpack.c.b16 %v517, %v515
    %v564 = vpack.c.b16 %v518, %v516
    %v565 = vpack.c.b16 %v521, %v519
    %v566 = vpack.c.b16 %v522, %v520
    %v567 = vpack.c.b16 %v525, %v523
    %v568 = vpack.c.b16 %v526, %v524
    %v569 = vpack.c.b16 %v529, %v527
    %v570 = vpack.c.b16 %v530, %v528
    %v571 = vpack.c.b16 %v533, %v531
    %v572 = vpack.c.b16 %v534, %v532
    %v573 = vpack.c.b16 %v537, %v535
    %v574 = vpack.c.b16 %v538, %v536
    %v575 = vpack.c.b16 %v541, %v539
    %v576 = vpack.c.b16 %v542, %v540
    %v577 = vpack.c.b16 %v545, %v543
    %v578 = vpack.c.b16 %v546, %v544
    %611 = vmatprep.subr.bf16.mxu0 %v548
    %612 = vmatpush1.bf16.msra.mxu0 %v547
    %613 = vmatprep.subr.bf16.mxu0 %v550
    %614 = vmatpush1.bf16.msra.mxu0 %v549
    %615 = vmatprep.subr.bf16.mxu0 %v552
    %616 = vmatpush1.bf16.msra.mxu0 %v551
    %617 = vmatprep.subr.bf16.mxu0 %v554
    %618 = vmatpush1.bf16.msra.mxu0 %v553
    %619 = vmatprep.subr.bf16.mxu0 %v556
    %620 = vmatpush1.bf16.msra.mxu0 %v555
    %621 = vmatprep.subr.bf16.mxu0 %v558
    %622 = vmatpush1.bf16.msra.mxu0 %v557
    %623 = vmatprep.subr.bf16.mxu0 %v560
    %624 = vmatpush1.bf16.msra.mxu0 %v559
    %625 = vmatprep.subr.bf16.mxu0 %v562
    %626 = vmatpush1.bf16.msra.mxu0 %v561
    %627 = vmatprep.subr.bf16.mxu0 %v564
    %628 = vmatpush1.bf16.msra.mxu0 %v563
    %629 = vmatprep.subr.bf16.mxu0 %v566
    %630 = vmatpush1.bf16.msra.mxu0 %v565
    %631 = vmatprep.subr.bf16.mxu0 %v568
    %632 = vmatpush1.bf16.msra.mxu0 %v567
    %633 = vmatprep.subr.bf16.mxu0 %v570
    %634 = vmatpush1.bf16.msra.mxu0 %v569
    %635 = vmatprep.subr.bf16.mxu0 %v572
    %636 = vmatpush1.bf16.msra.mxu0 %v571
    %637 = vmatprep.subr.bf16.mxu0 %v574
    %638 = vmatpush1.bf16.msra.mxu0 %v573
    %639 = vmatprep.subr.bf16.mxu0 %v576
    %640 = vmatpush1.bf16.msra.mxu0 %v575
    %641 = vmatprep.subr.bf16.mxu0 %v578
    %642 = vmatpush1.bf16.msra.mxu0 %v577
    %643 = vmatprep.mubr.bf16.mxu0 %v406
    %644 = vmatmul.mubr.bf16.gmra.mrb[0].mxu0 %v405
    %v645 = vpop.f32.mrb[0].mxu0
    %v646 = vadd.f32 %v444, %v645
    %v647 = vpop.f32.mrb[0].mxu0
    %v648 = vadd.f32 %v448, %v647
    %v649 = vpop.f32.mrb[0].mxu0
    %v650 = vadd.f32 %v444, %v649
    %v651 = vpop.f32.mrb[0].mxu0
    %v652 = vadd.f32 %v448, %v651
    %653 = vdwg.mxu0
    %v654 = vmax.f32 %v648, -20.0
    %v655 = vmax.f32 %v652, -20.0
    %v656 = vmin.f32 %v654, 2.0
    %v657 = vmin.f32 %v655, 2.0
    %v658 = vmul.f32 %v656, 1.442695
    %v659 = vpow.pop %v658
    %v660 = vmul.f32 %v657, 1.442695
    %v661 = vpow.pop %v660
    %662 = vst [vmem:[#allocation2] sm:$0xff] 0.0
    %663 = vst [vmem:[#allocation2 + $0x8] sm:$0xff] 0.0
    %v664 = vld [vmem:[%s7] sm:$0xff]
    %v665 = vld [vmem:[%s7 + $0x8] sm:$0xff]
    %vm666 = vcmask 64512
    %667 = vst.msk [vmem:[#allocation2] sm:$0xff] %vm666, %v664
    %668 = vst.msk [vmem:[#allocation2 + $0x8] sm:$0xff] %vm666, %v665
    %v669 = vld [vmem:[#allocation2] sm:$0xff]
    %v670 = vld [vmem:[#allocation2 + $0x8] sm:$0xff]
    %v671 = vmul.f32 %v659, %v669
    %v672 = vmul.f32 %v661, %v670
    %v673 = vadd.f32 %v646, %v671
    %v674 = vadd.f32 %v650, %v672
    %v675 = vtanh.pop %v673
    %v676 = vtanh.pop %v674
    %v677 = vmul.f32 %v669, -0.5
    %v678 = vmul.f32 %v670, -0.5
    %v679 = vmul.f32 %v677, %v669
    %v680 = vmul.f32 %v678, %v670
    %v681 = vsub.f32 %v679, %v656
    %v682 = vsub.f32 %v680, %v657
    %v683 = vsub.f32 %v681, 0.9189385
    %v684 = vsub.f32 %v682, 0.9189385
    %v685 = vmul.f32 %v673, -2.0
    %v686 = vmul.f32 %v674, -2.0
    %v687 = vmax.f32 %v685, 0.0
    %v688 = vmax.f32 %v686, 0.0
    %v689 = vand.u32 2147483647, %v685
    %v690 = vand.u32 2147483647, %v686
    %v691 = vsub.f32 0.0, %v689
    %v692 = vsub.f32 0.0, %v690
    %v693 = vmul.f32 %v691, 1.442695
    %v694 = vpow.pop %v693
    %v695 = vmul.f32 %v692, 1.442695
    %v696 = vpow.pop %v695
    %v697 = vadd.f32 %v694, 1.0
    %v698 = vlog2.pop %v697
    %v699 = vmul.f32 %v698, 0.6931472
    %v700 = vmul.f32 -0.5, %v694
    %v701 = vadd.f32 %v700, 1.0
    %v702 = vmul.f32 %v701, %v694
    %v703 = vand.u32 2147483647, %v694
    %vm704 = vcmp.lt.f32.partialorder %v703, 0.0004427343
    %v705 = vsel %vm704, %v702, %v699
    %v706 = vadd.f32 %v696, 1.0
    %v707 = vlog2.pop %v706
    %v708 = vmul.f32 %v707, 0.6931472
    %v709 = vmul.f32 -0.5, %v696
    %v710 = vadd.f32 %v709, 1.0
    %v711 = vmul.f32 %v710, %v696
    %v712 = vand.u32 2147483647, %v696
    %vm713 = vcmp.lt.f32.partialorder %v712, 0.0004427343
    %v714 = vsel %vm713, %v711, %v708
    %v715 = vadd.f32 %v687, %v705
    %v716 = vadd.f32 %v688, %v714
    %v717 = vsub.f32 0.6931472, %v673
    %v718 = vsub.f32 0.6931472, %v674
    %v719 = vsub.f32 %v717, %v715
    %v720 = vsub.f32 %v718, %v716
    %v721 = vmul.f32 %v719, 2.0
    %v722 = vmul.f32 %v720, 2.0
    %v723 = vsub.f32 %v683, %v721
    %v724 = vsub.f32 %v684, %v722
    %v725 = vlaneseq
    %v726 = vand.u32 %v725, 127
    %vm727 = vcmp.lt.s32.totalorder %v726, 8
    %v728 = vsel %vm727, %v723, 0.0
    %v729 = vsel %vm727, %v724, 0.0
    %730 = vadd.xlane.f32.xlu0 %v728
    %v731 = vpop.xlane.xlu0 %730
    %732 = vadd.xlane.f32.xlu0 %v729
    %v733 = vpop.xlane.xlu0 %732
    %v734 = vsel %vm727, %v675, 0.0
    %v735 = vsel %vm727, %v676, 0.0
    %vm736 = vcmp.eq.s32.totalorder %v726, 8
    %v737 = vsel %vm736, %v731, %v734
    %v738 = vsel %vm736, %v733, %v735
    %739 = vst [vmem:[%s8] sm:$0xff] %v737
    %740 = vst [vmem:[%s8 + $0x8] sm:$0xff] %v738
    // Predicated region
    $region42: #{_forward_train.1} parent=1 // pred_check
      _
    $region43: #{_forward_train.1} parent=1 // pred_check_branch
      %742 = sbr.rel (0) target = $region45
    $region44: #{_forward_train.1} parent=1 // pred_region
      _
    $region45: #{_forward_train.1} parent=1 // pred_fallthru
      _
    // Predicated region
    $region46: #{_forward_train.1} parent=1 // pred_check
      _
    $region47: #{_forward_train.1} parent=1 // pred_check_branch
      %744 = sbr.rel (0) target = $region49
    $region48: #{_forward_train.1} parent=1 // pred_region
      _
    $region49: #{_forward_train.1} parent=1 // pred_fallthru
      _
    %745 = vsyncpa [#allocation4], 1
    %746 = vsyncpa [#allocation6], 1

</llo_original>
